<compile_context>
chip_gen: v5e
topology: v5e:2x2
jax: 0.10.0
libtpu: 0.0.40
codegen_flags: <defaults>
</compile_context>

<pallas_src>
import functools

import jax
import jax.numpy as jnp
from jax.experimental import pallas as pl
from jax.experimental.pallas import tpu as pltpu


# ----------------------------------------------------------------------------
# Generation-aware budgets
# ----------------------------------------------------------------------------
def _vmem_budgets():
    """Return (per-tile byte budget, scoped-VMEM limit) for this TPU generation."""
    vmem_cap = None
    try:
        vmem_cap = int(pltpu.get_tpu_info().vmem_capacity_bytes)
    except Exception:
        vmem_cap = None
    if vmem_cap is None:
        # Unknown part (e.g. interpret mode): stay safe everywhere.
        return 4 * 1024 * 1024, 40 * 1024 * 1024
    if vmem_cap <= 80 * 1024 * 1024:
        # v7x: 64 MiB physical VMEM per TensorCore -> smaller tiles, headroom.
        return 3 * 1024 * 1024, 48 * 1024 * 1024
    # v5e / v6e: 128 MiB physical VMEM -> big streaming tiles.
    return 8 * 1024 * 1024, 64 * 1024 * 1024


def _round_up(a, m):
    return ((a + m - 1) // m) * m


def _pick_blocks(n, c, tv, dtype, tile_budget):
    """Choose (n_blk, c_blk, grid_n, grid_c, ragged_c) for the streaming passes."""
    itemsize = jnp.dtype(dtype).itemsize
    subl = max(8, 32 // itemsize)          # sublane multiple: 8 f32, 16 bf16, 32 int8
    row_bytes = tv * itemsize

    if c * row_bytes <= tile_budget or c <= subl:
        # Whole channel dim in one block (always layout-legal: full dim).
        c_blk = c
    else:
        # Largest sublane-aligned block that fits the budget, capped below c.
        fit = max(subl, (tile_budget // row_bytes) // subl * subl)
        c_blk = min(fit, (c // subl) * subl)
        # Prefer an exact divisor of c (no masked tail) if it is not much smaller.
        best_div = 0
        for d in range(c_blk, subl - 1, -subl):
            if c % d == 0:
                best_div = d
                break
        if best_div * 2 >= c_blk:
            c_blk = best_div
        elif c % c_blk != 0:
            # Balance ragged blocks so the tail block is not mostly wasted DMA.
            nblk = pl.cdiv(c, c_blk)
            c_blk = min(c_blk, _round_up(pl.cdiv(c, nblk), subl))

    grid_c = pl.cdiv(c, c_blk)
    ragged_c = (c % c_blk) != 0

    # Fold batch into the block when the whole-channel slab is small, so the
    # ~600-cycle per-grid-step overhead is amortized over longer DMAs.
    n_blk = 1
    if grid_c == 1:
        per_n = max(1, c_blk * row_bytes)
        n_blk = max(1, min(n, tile_budget // per_n))
        while n % n_blk != 0:              # keep batch blocks exact (no ragged n)
            n_blk -= 1
    grid_n = n // n_blk

    return n_blk, c_blk, grid_n, grid_c, ragged_c


# ----------------------------------------------------------------------------
# Kernels
# ----------------------------------------------------------------------------
def _abs_sum_kernel(x_ref, acc_ref):
    # x_ref: (n_blk, c_blk, t*v); acc_ref: (n_blk, 1, t*v) f32, resident over c axis.
    @pl.when(pl.program_id(1) == 0)
    def _init():
        acc_ref[...] = jnp.zeros_like(acc_ref)

    acc_ref[...] += jnp.sum(jnp.abs(x_ref[...].astype(jnp.float32)),
                            axis=1, keepdims=True)


def _abs_sum_kernel_masked(x_ref, acc_ref, *, c_total, c_blk):
    # Same as above but the last channel block is ragged: mask out-of-range rows.
    @pl.when(pl.program_id(1) == 0)
    def _init():
        acc_ref[...] = jnp.zeros_like(acc_ref)

    row = (pl.program_id(1) * c_blk
           + jax.lax.broadcasted_iota(jnp.int32, x_ref.shape, 1))
    vals = jnp.where(row < c_total,
                     jnp.abs(x_ref[...].astype(jnp.float32)),
                     jnp.float32(0.0))
    acc_ref[...] += jnp.sum(vals, axis=1, keepdims=True)


def _apply_mask_kernel(x_ref, m_ref, out_ref):
    # x_ref/out_ref: (n_blk, c_blk, t*v); m_ref: (n_blk, 1, t*v) f32 scaled mask.
    # Widen to f32 for the multiply (faithful for bf16 inputs); pass is DMA-bound.
    out_ref[...] = (x_ref[...].astype(jnp.float32) * m_ref[...]).astype(out_ref.dtype)


# ----------------------------------------------------------------------------
# Forward
# ----------------------------------------------------------------------------
def randomized_dropblock_ske(x, keep_prob, A, num_point, *, key,
                             training=True, block_size=7, donate_input=False):
    """JAX/Pallas port of Randomized_DropBlock_Ske.forward.

    x: (n, c, t, v), A: (v, v) adjacency, keep_prob: python float.
    `key` is a jax.random key (torch.bernoulli's RNG stream is not reproduced
    bit-exactly). `block_size` kept for API parity (unused, as in PyTorch).
    `donate_input=True` aliases the output onto x's HBM buffer; only enable it
    when x is dead after this op, otherwise XLA inserts a defensive copy.
    """
    if (not training) or keep_prob == 1:
        return x

    n, c, t, v = x.shape
    if num_point == 25:
        gamma = (1.0 - keep_prob) / (1 + 1.92)
    elif num_point == 20:
        gamma = (1.0 - keep_prob) / (1 + 1.9)
    else:
        gamma = (1.0 - keep_prob) / (1 + 1.92)  # 'undefined skeleton graph' case

    tv = t * v
    itemsize = jnp.dtype(x.dtype).itemsize
    x2 = x.reshape(n, c, tv)                      # lane-dense minor dim

    tile_budget, vmem_limit = _vmem_budgets()
    n_blk, c_blk, grid_n, grid_c, ragged_c = _pick_blocks(
        n, c, tv, x.dtype, tile_budget)

    # ---------- Pass 1: sum over c of |x|  ->  (n, 1, t*v) f32 ----------------
    if ragged_c:
        pass1_kernel = functools.partial(_abs_sum_kernel_masked,
                                         c_total=c, c_blk=c_blk)
    else:
        pass1_kernel = _abs_sum_kernel

    abs_sum = pl.pallas_call(
        pass1_kernel,
        out_shape=jax.ShapeDtypeStruct((n, 1, tv), jnp.float32),
        grid=(grid_n, grid_c),
        in_specs=[pl.BlockSpec((n_blk, c_blk, tv), lambda i, j: (i, j, 0))],
        out_specs=pl.BlockSpec((n_blk, 1, tv), lambda i, j: (i, 0, 0)),
        compiler_params=pltpu.CompilerParams(
            dimension_semantics=("parallel", "arbitrary"),
            vmem_limit_bytes=vmem_limit),
        cost_estimate=pl.CostEstimate(
            flops=2 * n * c * tv, transcendentals=0,
            bytes_accessed=n * c * tv * itemsize + n * tv * 4),
    )(x2)

    # ---------- Tiny (n, v) glue: normalize, bernoulli, graph propagate -------
    input_abs = abs_sum.reshape(n, t, v).sum(axis=1) / float(c * t)   # mean_t mean_c |x|
    input_abs = input_abs / jnp.sum(input_abs) * float(n * v)
    p = jnp.minimum(input_abs * gamma, 1.0)
    m_seed = jax.random.bernoulli(key, p).astype(jnp.float32)         # (n, v)
    m = jnp.dot(m_seed, A.astype(jnp.float32),
                preferred_element_type=jnp.float32)                    # (n, v)
    # M[M > 0.001] = 1.0 ; M[M < 0.5] = 0.0
    m = jnp.where(m > 0.001, 1.0, jnp.where(m < 0.5, 0.0, m))
    mask = 1.0 - m                                                     # entries are 0/1
    # mask sum is integer-valued; max(.,1) only guards the all-dropped case
    # (where the torch reference would produce NaN).
    scale = float(n * v) / jnp.maximum(jnp.sum(mask), 1.0)
    mask_scaled = mask * scale
    # Pre-tile over t so the apply pass is a pure lane-dense multiply. Keep f32.
    mask_tv = jnp.tile(mask_scaled, (1, t)).reshape(n, 1, tv).astype(jnp.float32)

    # ---------- Pass 2: out = x * mask_scaled (streamed) ----------------------
    # Single flattened "parallel" grid axis: consecutive steps stay inside one
    # batch block (mask tile not re-DMA'd) and v7x's two TensorCores split the
    # stream evenly even when n (or grid_n) is 1 or odd.
    steps = grid_n * grid_c

    out2 = pl.pallas_call(
        _apply_mask_kernel,
        out_shape=jax.ShapeDtypeStruct((n, c, tv), x.dtype),
        grid=(steps,),
        in_specs=[pl.BlockSpec((n_blk, c_blk, tv),
                               lambda i: (i // grid_c, i % grid_c, 0)),
                  pl.BlockSpec((n_blk, 1, tv),
                               lambda i: (i // grid_c, 0, 0))],
        out_specs=pl.BlockSpec((n_blk, c_blk, tv),
                               lambda i: (i // grid_c, i % grid_c, 0)),
        input_output_aliases=({0: 0} if donate_input else {}),
        compiler_params=pltpu.CompilerParams(
            dimension_semantics=("parallel",),
            vmem_limit_bytes=vmem_limit),
        cost_estimate=pl.CostEstimate(
            flops=n * c * tv, transcendentals=0,
            bytes_accessed=2 * n * c * tv * itemsize + n * tv * 4),
    )(x2, mask_tv)

    return out2.reshape(n, c, t, v)


def _make_skeleton_adjacency(v):
    """Deterministic synthetic normalized adjacency: ring graph + self loops."""
    eye = jnp.eye(v, dtype=jnp.float32)
    ring = jnp.roll(eye, 1, axis=1) + jnp.roll(eye, -1, axis=1)
    adj = eye + ring
    return adj / jnp.sum(adj, axis=1, keepdims=True)


if __name__ == "__main__":
    root = jax.random.PRNGKey(0)
    k_data, k_drop = jax.random.split(root)

    n, c, t, num_point = 2, 4, 16, 25            # v = num_point = 25 (skeleton graph)
    x = jax.random.normal(k_data, (n, c, t, num_point), dtype=jnp.float32)
    A = _make_skeleton_adjacency(num_point)      # (25, 25)

    keep_prob = 0.9
    out = randomized_dropblock_ske(x, keep_prob, A, num_point,
                                   key=k_drop, training=True)
    out = jax.block_until_ready(out)

    assert out.shape == x.shape and out.dtype == x.dtype
    assert bool(jnp.all(jnp.isfinite(out)))
    print("KERNEL_OK")
</pallas_src>

<mosaic_0001>
module attributes {stable_mosaic.version = 11 : i64} {
  func.func @_abs_sum_kernel(%arg0: i32, %arg1: i32, %arg2: memref<2x4x400xf32, #tpu.memory_space<vmem>>, %arg3: memref<2x1x400xf32, #tpu.memory_space<vmem>>) attributes {dimension_semantics = [#tpu.dimension_semantics<parallel>, #tpu.dimension_semantics<arbitrary>], iteration_bounds = array<i64: 1, 1>, scalar_prefetch = 0 : i64, scratch_operands = 0 : i64, tpu.core_type = #tpu.core_type<tc>, window_params = [{transform_indices = @transform_0, window_bounds = array<i64: 2, 4, 400>}, {transform_indices = @transform_1, window_bounds = array<i64: 2, 1, 400>}]} {
    %c0_i32 = arith.constant 0 : i32
    %0 = arith.cmpi eq, %arg1, %c0_i32 : i32
    %1 = arith.extui %0 : i1 to i32
    %c0_i32_0 = arith.constant 0 : i32
    %2 = arith.cmpi ne, %1, %c0_i32_0 : i32
    scf.if %2 {
      %cst_9 = arith.constant 0.000000e+00 : f32
      %10 = vector.broadcast %cst_9 : f32 to vector<2x1x400xf32>
      %c0_10 = arith.constant 0 : index
      %c0_11 = arith.constant 0 : index
      %c0_12 = arith.constant 0 : index
      %11 = vector.load %arg3[%c0_10, %c0_11, %c0_12] : memref<2x1x400xf32, #tpu.memory_space<vmem>>, vector<2x1x400xf32>
      tpu.vector_store %arg3[%c0_10, %c0_11, %c0_12], %10 {strides = array<i32>} : memref<2x1x400xf32, #tpu.memory_space<vmem>>, vector<2x1x400xf32>,
    } else {
    }
    %c0 = arith.constant 0 : index
    %c0_1 = arith.constant 0 : index
    %c0_2 = arith.constant 0 : index
    %3 = vector.load %arg3[%c0, %c0_1, %c0_2] : memref<2x1x400xf32, #tpu.memory_space<vmem>>, vector<2x1x400xf32>
    %c0_3 = arith.constant 0 : index
    %c0_4 = arith.constant 0 : index
    %c0_5 = arith.constant 0 : index
    %4 = vector.load %arg2[%c0_3, %c0_4, %c0_5] : memref<2x4x400xf32, #tpu.memory_space<vmem>>, vector<2x4x400xf32>
    %5 = math.absf %4 : vector<2x4x400xf32>
    %cst = arith.constant dense<0.000000e+00> : vector<2x400xf32>
    %6 = vector.multi_reduction <add>, %5, %cst [1] : vector<2x4x400xf32> to vector<2x400xf32>
    %7 = vector.shape_cast %6 : vector<2x400xf32> to vector<2x1x400xf32>
    %8 = arith.addf %3, %7 : vector<2x1x400xf32>
    %c0_6 = arith.constant 0 : index
    %c0_7 = arith.constant 0 : index
    %c0_8 = arith.constant 0 : index
    %9 = vector.load %arg3[%c0_6, %c0_7, %c0_8] : memref<2x1x400xf32, #tpu.memory_space<vmem>>, vector<2x1x400xf32>
    tpu.vector_store %arg3[%c0_6, %c0_7, %c0_8], %8 {strides = array<i32>} : memref<2x1x400xf32, #tpu.memory_space<vmem>>, vector<2x1x400xf32>,
    return
  }
  func.func @transform_0(%arg0: i32, %arg1: i32) -> (i32, i32, i32) {
    %c0_i32 = arith.constant 0 : i32
    %c0_i32_0 = arith.constant 0 : i32
    return %arg0, %arg1, %c0_i32 : i32, i32, i32
  }
  func.func @transform_1(%arg0: i32, %arg1: i32) -> (i32, i32, i32) {
    %c0_i32 = arith.constant 0 : i32
    %c0_i32_0 = arith.constant 0 : i32
    %c0_i32_1 = arith.constant 0 : i32
    return %arg0, %c0_i32, %c0_i32_0 : i32, i32, i32
  }
}

</mosaic_0001>

<llo_original>
// kernel: tpu_custom_call.1
$region0: #{tpu_custom_call.1}
  #allocation0 [shape = 'u32[]', space=smem, size = 0x4, offset = 0x4, fixed_abs, tag = 'smem constant byte address 0x4 - core index']
  #allocation1 [shape = 'u32[72,128]{1,0:T(1,128)}', space=vmem, size = 0x9000, scoped, tag = 'internal scratch']
  %s0 = inlined_call_operand.hbm [shape: f32[2,4,400], index: 0, kind: input, shape index: {}]
  %s1 = inlined_call_operand.hbm [shape: f32[2,1,400], index: 1, kind: output, shape index: {}]
  %s2 = sld [smem:[#allocation0]]
  $region22: #{tpu_custom_call.1} parent=0
    _
  %s4 = ssub.s32 1, %s2
  %s5 = scalar_select 0, %s4, %s2
  $region1: #{tpu_custom_call.1} parent=0
    #allocation2 [shape = 'u8[16384]{0}', space=vmem, size = 0x4000, scoped, tag = 'input window, operand 0, single buffered']
    #allocation3 [shape = 's32[1]{0}', space=sflag, size = 0x4, scoped, tag = 'scoped memory for tpu_custom_call.1']
    #allocation4 [shape = 's32[1]{0}', space=sflag, size = 0x4, scoped, tag = 'scoped memory for tpu_custom_call.1']
    #allocation5 [shape = 'u8[4096]{0}', space=vmem, size = 0x1000, scoped, tag = 'output window, operand 0, single buffered']
    %6 = vsyncpa [#allocation3], 0
    %7 = vsyncpa [#allocation4], 0
    // Predicated region
    $region2: #{tpu_custom_call.1} parent=1 // pred_check
      _
    $region3: #{tpu_custom_call.1} parent=1 // pred_check_branch
      %9 = sbr.rel (0) target = $region5
    $region4: #{tpu_custom_call.1} parent=1 // pred_region
      %11 = vsyncadd [#allocation3], 0
      %s12 = sshll.u32 %s0, 4
      %s13 = int_to_ptr.hbm [resolvable:$true] %s12
      %s14 = sshll.u32 [#allocation2], 4
      %s15 = int_to_ptr.vmem [resolvable:$true] %s14
      %20 = dma.hbm_to_vmem [thread:$0]  %s13, 512, %s15, [#allocation3], 256, 256, 16
    $region5: #{tpu_custom_call.1} parent=1 // pred_fallthru
      _
    // Predicated region
    $region6: #{tpu_custom_call.1} parent=1 // pred_check
      _
    $region7: #{tpu_custom_call.1} parent=1 // pred_check_branch
      %22 = sbr.rel (0) target = $region9
    $region8: #{tpu_custom_call.1} parent=1 // pred_region
      %24 = dma.done [#allocation3], 512
    $region9: #{tpu_custom_call.1} parent=1 // pred_fallthru
      _
    %p25 = scmp.eq.s32.totalorder 0, 0
    // Predicated region
    $region10: #{tpu_custom_call.1} parent=1 // pred_check
      %p26 = pneg %p25
    $region11: #{tpu_custom_call.1} parent=1 // pred_check_branch
      %28 = sbr.rel (%p26) target = $region13
    $region12: #{tpu_custom_call.1} parent=1 // pred_region
      %v29 = vlaneseq
      %vm30 = vcmp.ge.s32.totalorder %v29, 0
      %vm31 = vcmp.lt.s32.totalorder %v29, 400
      %vm32 = vmand %vm30, %vm31
      %33 = vst.msk [vmem:[#allocation5] sm:$0xf] %vm32, 0.0
      %34 = vst.msk [vmem:[#allocation5 + $0x4] sm:$0xf] %vm32, 0.0
    $region13: #{tpu_custom_call.1} parent=1 // pred_fallthru
      _
    %v35 = vld [vmem:[#allocation5] sm:$0xf]
    %v36 = vld [vmem:[#allocation5 + $0x4] sm:$0xf]
    %v37 = vld [vmem:[#allocation2] sm:$0xff]
    %v38 = vld [vmem:[#allocation2 + $0x8] sm:$0xff]
    %v39 = vld [vmem:[#allocation2 + $0x10] sm:$0xff]
    %v40 = vld [vmem:[#allocation2 + $0x18] sm:$0xff]
    %v41 = vand.u32 2147483647, %v37
    %v42 = vand.u32 2147483647, %v38
    %v43 = vand.u32 2147483647, %v39
    %v44 = vand.u32 2147483647, %v40
    %49 = vst [vmem:[#allocation1] ss:$2 sm:$0xff] %v41
    %s50 = scalar_lea.vmem [#allocation1], 16
    %51 = vst [vmem:[%s50] ss:$2 sm:$0xff] %v42
    %v52 = vld.sshfl [vmem:[#allocation1] sm:$0xff pattern:$0x75316420]
    %v53 = vld.sshfl [vmem:[#allocation1 + $0x8] sm:$0xff pattern:$0x75316420]
    %v54 = vld.sshfl [vmem:[#allocation1 + $0x10] sm:$0xff pattern:$0x75316420]
    %v55 = vld.sshfl [vmem:[#allocation1 + $0x18] sm:$0xff pattern:$0x75316420]
    %s56 = scalar_lea.vmem [#allocation1], 32
    %57 = vst [vmem:[%s56] ss:$2 sm:$0xff] %v43
    %s58 = scalar_lea.vmem [#allocation1], 48
    %59 = vst [vmem:[%s58] ss:$2 sm:$0xff] %v44
    %v60 = vld.sshfl [vmem:[#allocation1 + $0x20] sm:$0xff pattern:$0x75316420]
    %v61 = vld.sshfl [vmem:[#allocation1 + $0x28] sm:$0xff pattern:$0x75316420]
    %v62 = vld.sshfl [vmem:[#allocation1 + $0x30] sm:$0xff pattern:$0x75316420]
    %v63 = vld.sshfl [vmem:[#allocation1 + $0x38] sm:$0xff pattern:$0x75316420]
    %vm72 = vcmask 1043456
    %v73 = vsel %vm72, %v52, 0.0
    %v74 = vrot.slane %v73, 4
    %v75 = vadd.f32 %v73, %v74
    %v76 = vrot.slane %v75, 2
    %v77 = vadd.f32 %v75, %v76
    %v78 = vrot.slane %v77, 1
    %v79 = vadd.f32 %v77, %v78
    %v80 = vsel %vm72, %v53, 0.0
    %v81 = vrot.slane %v80, 4
    %v82 = vadd.f32 %v80, %v81
    %v83 = vrot.slane %v82, 2
    %v84 = vadd.f32 %v82, %v83
    %v85 = vrot.slane %v84, 1
    %v86 = vadd.f32 %v84, %v85
    %v87 = vsel %vm72, %v54, 0.0
    %v88 = vrot.slane %v87, 4
    %v89 = vadd.f32 %v87, %v88
    %v90 = vrot.slane %v89, 2
    %v91 = vadd.f32 %v89, %v90
    %v92 = vrot.slane %v91, 1
    %v93 = vadd.f32 %v91, %v92
    %vm94 = vcmask 125952
    %v95 = vsel %vm94, %v55, 0.0
    %v96 = vrot.slane %v95, 4
    %v97 = vadd.f32 %v95, %v96
    %v98 = vrot.slane %v97, 2
    %v99 = vadd.f32 %v97, %v98
    %v100 = vrot.slane %v99, 1
    %v101 = vadd.f32 %v99, %v100
    %v102 = vsel %vm72, %v60, 0.0
    %v103 = vrot.slane %v102, 4
    %v104 = vadd.f32 %v102, %v103
    %v105 = vrot.slane %v104, 2
    %v106 = vadd.f32 %v104, %v105
    %v107 = vrot.slane %v106, 1
    %v108 = vadd.f32 %v106, %v107
    %v109 = vsel %vm72, %v61, 0.0
    %v110 = vrot.slane %v109, 4
    %v111 = vadd.f32 %v109, %v110
    %v112 = vrot.slane %v111, 2
    %v113 = vadd.f32 %v111, %v112
    %v114 = vrot.slane %v113, 1
    %v115 = vadd.f32 %v113, %v114
    %v116 = vsel %vm72, %v62, 0.0
    %v117 = vrot.slane %v116, 4
    %v118 = vadd.f32 %v116, %v117
    %v119 = vrot.slane %v118, 2
    %v120 = vadd.f32 %v118, %v119
    %v121 = vrot.slane %v120, 1
    %v122 = vadd.f32 %v120, %v121
    %v123 = vsel %vm94, %v63, 0.0
    %v124 = vrot.slane %v123, 4
    %v125 = vadd.f32 %v123, %v124
    %v126 = vrot.slane %v125, 2
    %v127 = vadd.f32 %v125, %v126
    %v128 = vrot.slane %v127, 1
    %v129 = vadd.f32 %v127, %v128
    %v138 = vrot.slane %v86, 7
    %v139 = vrot.slane %v93, 6
    %v140 = vrot.slane %v101, 5
    %v141 = vrot.slane %v115, 7
    %v142 = vrot.slane %v122, 6
    %v143 = vrot.slane %v129, 5
    %vm144 = vcmask 1040384
    %v145 = vsel %vm144, %v79, %v138
    %vm146 = vcmask 1042434
    %v147 = vsel %vm146, %v139, %v140
    %vm148 = vcmask 1041408
    %v149 = vsel %vm148, %v145, %v147
    %v150 = vsel %vm144, %v108, %v141
    %v151 = vsel %vm146, %v142, %v143
    %v152 = vsel %vm148, %v150, %v151
    %v155 = vadd.f32 %v35, %v149
    %v156 = vadd.f32 %v36, %v152
    %v157 = vlaneseq
    %vm158 = vcmp.ge.s32.totalorder %v157, 0
    %vm159 = vcmp.lt.s32.totalorder %v157, 400
    %vm160 = vmand %vm158, %vm159
    %161 = vst.msk [vmem:[#allocation5] sm:$0xf] %vm160, %v155
    %162 = vst.msk [vmem:[#allocation5 + $0x4] sm:$0xf] %vm160, %v156
    // Predicated region
    $region14: #{tpu_custom_call.1} parent=1 // pred_check
      _
    $region15: #{tpu_custom_call.1} parent=1 // pred_check_branch
      %164 = sbr.rel (0) target = $region17
    $region16: #{tpu_custom_call.1} parent=1 // pred_region
      %166 = vsyncadd [#allocation4], 0
      %s167 = sshll.u32 [#allocation5], 4
      %s168 = int_to_ptr.vmem [resolvable:$true] %s167
      %s169 = sshll.u32 %s1, 4
      %s170 = int_to_ptr.hbm [resolvable:$true] %s169
      %175 = dma.vmem_to_hbm [thread:$0]  %s168, 128, %s170, [#allocation4], 64, 64, 4
    $region17: #{tpu_custom_call.1} parent=1 // pred_fallthru
      _
    // Predicated region
    $region18: #{tpu_custom_call.1} parent=1 // pred_check
      _
    $region19: #{tpu_custom_call.1} parent=1 // pred_check_branch
      %177 = sbr.rel (0) target = $region21
    $region20: #{tpu_custom_call.1} parent=1 // pred_region
      %179 = dma.done [#allocation4], 128
    $region21: #{tpu_custom_call.1} parent=1 // pred_fallthru
      _
    %180 = vsyncpa [#allocation3], 1
    %181 = vsyncpa [#allocation4], 1

</llo_original>
